<compile_context>
chip_gen: v6e
topology: v6e:2x2x1
jax: 0.10.0
libtpu: 0.0.40
codegen_flags: <defaults>
</compile_context>

<pallas_src>
import functools

import jax
import jax.numpy as jnp
from jax.experimental import pallas as pl
from jax.experimental.pallas import tpu as pltpu


def _round_up(x, m):
    return ((x + m - 1) // m) * m


def _kl_simcc_kernel(pred_ref, tgt_ref, w_ref, out_ref, *,
                     beta, label_beta, label_softmax,
                     tile_rows, slab_rows, num_valid_rows):
    """One grid step: (tile_rows, W) rows -> (8, W) lane-dense partial sums."""
    tile_idx = pl.program_id(0)
    W = pred_ref.shape[-1]
    n_slabs = tile_rows // slab_rows
    # Only mask when the row count is genuinely ragged w.r.t. the tile size.
    ragged = (num_valid_rows % tile_rows) != 0

    def slab_partial(slab_start):
        pred = pred_ref[pl.ds(slab_start, slab_rows), :].astype(jnp.float32)
        if beta != 1.0:
            pred = pred * beta
        # log_softmax over the SimCC bin (lane) axis.
        m = jnp.max(pred, axis=-1, keepdims=True)
        z = pred - m
        lse = jnp.log(jnp.sum(jnp.exp(z), axis=-1, keepdims=True))
        log_pt = z - lse

        tgt = tgt_ref[pl.ds(slab_start, slab_rows), :].astype(jnp.float32)
        if label_softmax:
            t = tgt * label_beta if label_beta != 1.0 else tgt
            tz = t - jnp.max(t, axis=-1, keepdims=True)
            e = jnp.exp(tz)                                   # reused below
            denom = jnp.sum(e, axis=-1, keepdims=True)
            inv = 1.0 / denom                                 # exact, per-row
            t_soft = e * inv
            log_t = tz - jnp.log(denom)
            kl = t_soft * (log_t - log_pt)
        else:
            # PyTorch KLDivLoss(reduction='none'): target*(log(target)-input),
            # zero contribution where target <= 0.
            safe_log_t = jnp.log(jnp.where(tgt > 0, tgt, 1.0))
            kl = jnp.where(tgt > 0, tgt * (safe_log_t - log_pt), 0.0)

        # Weight already folds 1/W (row mean), target_weight and mask_weight.
        w = w_ref[pl.ds(slab_start, slab_rows), :]
        kl_w = kl * w

        if ragged:
            # Mask the kl values themselves (not only via weight): the tail of
            # the last block is uninitialized data and could produce inf/NaN.
            row_in_tile = jax.lax.broadcasted_iota(jnp.int32, (slab_rows, 1), 0)
            row_global = tile_idx * tile_rows + slab_start + row_in_tile
            kl_w = jnp.where(row_global < num_valid_rows, kl_w, 0.0)

        # slab_rows -> 8 sublanes with pure vector adds (layout-preserving
        # split of the sublane axis at a multiple of 8).
        return jnp.sum(kl_w.reshape(slab_rows // 8, 8, W), axis=0)

    if n_slabs == 1:
        out_ref[...] = slab_partial(0)
    else:
        def body(i, acc):
            start = pl.multiple_of(i * slab_rows, slab_rows)
            return acc + slab_partial(start)
        out_ref[...] = jax.lax.fori_loop(
            0, n_slabs, body, jnp.zeros((8, W), jnp.float32))


def _choose_tiling(num_rows, width, itemsize):
    """Pick (tile_rows, slab_rows, vmem_limit_bytes) for the row pipeline."""
    rows8 = _round_up(num_rows, 8)

    # I/O footprint per tile row: pred+tgt double-buffered + the weight block
    # (lane-padded (tile,1)->(tile,128) f32 in VMEM, double-buffered).
    io_per_row = 2 * 2 * width * itemsize + 2 * 128 * 4
    io_budget = 12 * 1024 * 1024
    max_rows = max(8, ((io_budget // io_per_row) // 8) * 8)

    # >=4 grid steps when R is large (v7x megacore + pipelining), but keep
    # tiles >=512 rows for HBM efficiency; hard cap 2048 rows.
    target = max(512, _round_up(-(-num_rows // 4), 8))
    tile_rows = min(max_rows, 2048, target, rows8)
    tile_rows = max(8, (tile_rows // 8) * 8)

    # Slab bounds the live full-width f32 temporaries (~7 arrays) in-kernel.
    temp_budget = 6 * 1024 * 1024
    max_slab = max(8, ((temp_budget // (7 * width * 4)) // 8) * 8)
    slab_rows = min(256, max_slab, tile_rows)
    if tile_rows > slab_rows:
        tile_rows = (tile_rows // slab_rows) * slab_rows
    else:
        slab_rows = tile_rows

    # Explicit VMEM budget: I/O buffers + weight block + slab temporaries.
    io_bytes = 2 * 2 * tile_rows * width * itemsize
    w_bytes = 2 * tile_rows * 128 * 4
    temp_bytes = 7 * slab_rows * width * 4
    out_bytes = 2 * 8 * width * 4
    vmem_bytes = io_bytes + w_bytes + temp_bytes + out_bytes + (4 << 20)
    vmem_bytes = int(min(max(vmem_bytes, 16 << 20), 48 << 20))
    return tile_rows, slab_rows, vmem_bytes


def _simcc_weighted_loss_sum(pred2d, tgt2d, weight, *, beta, label_beta,
                             label_softmax):
    """Sum over all rows of weighted per-row KL loss. pred2d/tgt2d: (R, W)."""
    R, W = pred2d.shape
    itemsize = jnp.dtype(pred2d.dtype).itemsize
    tile_rows, slab_rows, vmem_bytes = _choose_tiling(R, W, itemsize)
    num_tiles = -(-R // tile_rows)

    # Fold the 1/W "mean over bins" into the per-row weight (tiny vector; no
    # padding of pred/gt in HBM, the ragged tail is masked in-kernel).
    w2d = (weight.astype(jnp.float32) * (1.0 / float(W))).reshape(R, 1)

    kernel = functools.partial(
        _kl_simcc_kernel, beta=float(beta), label_beta=float(label_beta),
        label_softmax=bool(label_softmax), tile_rows=tile_rows,
        slab_rows=slab_rows, num_valid_rows=R)

    cost = pl.CostEstimate(
        flops=12 * R * W,
        transcendentals=2 * R * W,
        bytes_accessed=2 * R * W * itemsize + R * 4 + num_tiles * 8 * W * 4,
    )

    partials = pl.pallas_call(
        kernel,
        out_shape=jax.ShapeDtypeStruct((num_tiles * 8, W), jnp.float32),
        grid_spec=pltpu.PrefetchScalarGridSpec(
            num_scalar_prefetch=0,
            grid=(num_tiles,),
            in_specs=[
                pl.BlockSpec((tile_rows, W), lambda i: (i, 0)),
                pl.BlockSpec((tile_rows, W), lambda i: (i, 0)),
                pl.BlockSpec((tile_rows, 1), lambda i: (i, 0)),
            ],
            out_specs=pl.BlockSpec((8, W), lambda i: (i, 0)),
        ),
        compiler_params=pltpu.CompilerParams(
            dimension_semantics=("parallel",),
            vmem_limit_bytes=vmem_bytes),
        cost_estimate=cost,
    )(pred2d, tgt2d, w2d)
    return jnp.sum(partials)


def kl_discret_loss(pred_simcc, gt_simcc, target_weight, *,
                    beta=1.0, label_softmax=False, label_beta=10.0,
                    use_target_weight=True, mask=None, mask_weight=1.0):
    """JAX/Pallas equivalent of KLDiscretLoss.forward. Returns a scalar.

    pred/gt may be bf16 (kernel upcasts to f32 in VMEM), which halves HBM
    traffic of this bandwidth-bound loss.
    """
    N, K, _ = pred_simcc[0].shape
    R = N * K

    if use_target_weight:
        weight = jnp.asarray(target_weight, jnp.float32).reshape(-1)
    else:
        weight = jnp.ones((R,), jnp.float32)

    # Fold mask scaling into the per-row weights (equivalent to the in-place
    # t_loss[:, mask] *= mask_weight in the PyTorch module).
    if mask is not None:
        wm = weight.reshape(N, K)
        wm = wm.at[:, mask].multiply(mask_weight)
        weight = wm.reshape(-1)

    # One pallas_call per SimCC axis (no concat: avoids an extra HBM pass).
    loss = jnp.float32(0.0)
    for pred, tgt in zip(pred_simcc, gt_simcc):
        p2 = pred.reshape(-1, pred.shape[-1])
        t2 = tgt.reshape(-1, tgt.shape[-1])
        loss = loss + _simcc_weighted_loss_sum(
            p2, t2, weight, beta=beta, label_beta=label_beta,
            label_softmax=label_softmax)
    return loss / K


def _reference_loss(pred_simcc, gt_simcc, target_weight, *, beta, label_softmax,
                    label_beta, use_target_weight=True, mask=None,
                    mask_weight=1.0):
    """Pure-JAX reference mirroring the PyTorch module (for verification)."""
    N, K, _ = pred_simcc[0].shape
    w = (jnp.asarray(target_weight, jnp.float32).reshape(-1)
         if use_target_weight else jnp.ones((N * K,), jnp.float32))
    total = jnp.float32(0.0)
    for pred, tgt in zip(pred_simcc, gt_simcc):
        p = pred.reshape(-1, pred.shape[-1]).astype(jnp.float32) * beta
        log_pt = jax.nn.log_softmax(p, axis=1)
        t = tgt.reshape(-1, tgt.shape[-1]).astype(jnp.float32)
        if label_softmax:
            t = jax.nn.softmax(t * label_beta, axis=1)
        kl = jnp.where(t > 0,
                       t * (jnp.log(jnp.where(t > 0, t, 1.0)) - log_pt), 0.0)
        row = jnp.mean(kl, axis=1) * w
        if mask is not None:
            rm = row.reshape(N, K)
            rm = rm.at[:, mask].multiply(mask_weight)
            row = rm.reshape(-1)
        total = total + row.sum()
    return total / K


def _check(pred_simcc, gt_simcc, tw, cfg, rtol=1e-4, atol=1e-5):
    out = jax.block_until_ready(
        kl_discret_loss(pred_simcc, gt_simcc, tw, **cfg))
    ref = jax.block_until_ready(
        _reference_loss(pred_simcc, gt_simcc, tw, **cfg))
    assert jnp.allclose(out, ref, rtol=rtol, atol=atol), (out, ref, cfg)


if __name__ == "__main__":
    key = jax.random.PRNGKey(0)

    # Case 1: small shapes consistent with the module (batch=2, keypoints=4,
    # SimCC bins 256 / 128 for the x / y axes).
    N, K = 2, 4
    Wx, Wy = 256, 128
    k1, k2, k3, k4, k5 = jax.random.split(key, 5)
    pred_x = jax.random.normal(k1, (N, K, Wx), jnp.float32)
    pred_y = jax.random.normal(k2, (N, K, Wy), jnp.float32)
    gt_x = jax.random.normal(k3, (N, K, Wx), jnp.float32)
    gt_y = jax.random.normal(k4, (N, K, Wy), jnp.float32)
    tw = jax.random.uniform(k5, (N, K), jnp.float32)

    _check((pred_x, pred_y), (gt_x, gt_y), tw,
           dict(beta=1.0, label_softmax=True, label_beta=10.0,
                use_target_weight=True))
    _check((pred_x, pred_y), (gt_x, gt_y), tw,
           dict(beta=1.0, label_softmax=False, label_beta=10.0,
                use_target_weight=True))

    # Case 2: ragged row count (R=15, not a multiple of the 8-sublane tile)
    # exercises the in-kernel tail mask.
    N2, K2, W2 = 3, 5, 128
    k1, k2, k3, k4, k5 = jax.random.split(jax.random.PRNGKey(1), 5)
    px = jax.random.normal(k1, (N2, K2, W2), jnp.float32)
    py = jax.random.normal(k2, (N2, K2, W2), jnp.float32)
    gx = jax.random.normal(k3, (N2, K2, W2), jnp.float32)
    gy = jax.random.normal(k4, (N2, K2, W2), jnp.float32)
    tw2 = jax.random.uniform(k5, (N2, K2), jnp.float32)
    _check((px, py), (gx, gy), tw2,
           dict(beta=2.0, label_softmax=True, label_beta=10.0,
                use_target_weight=True))

    # Case 3: R=512 rows exercises the multi-slab fori_loop path.
    N3, K3, W3 = 8, 64, 128
    k1, k2, k3, k4, k5 = jax.random.split(jax.random.PRNGKey(2), 5)
    px = jax.random.normal(k1, (N3, K3, W3), jnp.float32)
    py = jax.random.normal(k2, (N3, K3, W3), jnp.float32)
    gx = jax.random.normal(k3, (N3, K3, W3), jnp.float32)
    gy = jax.random.normal(k4, (N3, K3, W3), jnp.float32)
    tw3 = jax.random.uniform(k5, (N3, K3), jnp.float32)
    _check((px, py), (gx, gy), tw3,
           dict(beta=1.0, label_softmax=True, label_beta=10.0,
                use_target_weight=True))

    print("KERNEL_OK")
</pallas_src>

<mosaic_0001>
module attributes {stable_mosaic.version = 11 : i64} {
  func.func @_kl_simcc_kernel(%arg0: i32, %arg1: memref<8x256xf32, #tpu.memory_space<vmem>>, %arg2: memref<8x256xf32, #tpu.memory_space<vmem>>, %arg3: memref<8x1xf32, #tpu.memory_space<vmem>>, %arg4: memref<8x256xf32, #tpu.memory_space<vmem>>) attributes {dimension_semantics = [#tpu.dimension_semantics<parallel>], iteration_bounds = array<i64: 1>, scalar_prefetch = 0 : i64, scratch_operands = 0 : i64, tpu.core_type = #tpu.core_type<tc>, window_params = [{transform_indices = @transform_0, window_bounds = array<i64: 8, 256>}, {transform_indices = @transform_1, window_bounds = array<i64: 8, 256>}, {transform_indices = @transform_2, window_bounds = array<i64: 8, 1>}, {transform_indices = @transform_3, window_bounds = array<i64: 8, 256>}]} {
    %c0 = arith.constant 0 : index
    %c0_0 = arith.constant 0 : index
    %0 = vector.load %arg1[%c0, %c0_0] : memref<8x256xf32, #tpu.memory_space<vmem>>, vector<8x256xf32>
    %cst = arith.constant dense<0xFF800000> : vector<8xf32>
    %1 = vector.multi_reduction <maximumf>, %0, %cst [1] : vector<8x256xf32> to vector<8xf32>
    %2 = vector.shape_cast %1 : vector<8xf32> to vector<8x1xf32>
    %3 = vector.broadcast %2 : vector<8x1xf32> to vector<8x256xf32>
    %4 = arith.subf %0, %3 : vector<8x256xf32>
    %5 = math.exp %4 : vector<8x256xf32>
    %cst_1 = arith.constant dense<0.000000e+00> : vector<8xf32>
    %6 = vector.multi_reduction <add>, %5, %cst_1 [1] : vector<8x256xf32> to vector<8xf32>
    %7 = vector.shape_cast %6 : vector<8xf32> to vector<8x1xf32>
    %8 = math.log %7 : vector<8x1xf32>
    %9 = vector.broadcast %8 : vector<8x1xf32> to vector<8x256xf32>
    %10 = arith.subf %4, %9 : vector<8x256xf32>
    %c0_2 = arith.constant 0 : index
    %c0_3 = arith.constant 0 : index
    %11 = vector.load %arg2[%c0_2, %c0_3] : memref<8x256xf32, #tpu.memory_space<vmem>>, vector<8x256xf32>
    %cst_4 = arith.constant 1.000000e+01 : f32
    %12 = vector.broadcast %cst_4 : f32 to vector<8x256xf32>
    %13 = arith.mulf %11, %12 : vector<8x256xf32>
    %cst_5 = arith.constant dense<0xFF800000> : vector<8xf32>
    %14 = vector.multi_reduction <maximumf>, %13, %cst_5 [1] : vector<8x256xf32> to vector<8xf32>
    %15 = vector.shape_cast %14 : vector<8xf32> to vector<8x1xf32>
    %16 = vector.broadcast %15 : vector<8x1xf32> to vector<8x256xf32>
    %17 = arith.subf %13, %16 : vector<8x256xf32>
    %18 = math.exp %17 : vector<8x256xf32>
    %cst_6 = arith.constant dense<0.000000e+00> : vector<8xf32>
    %19 = vector.multi_reduction <add>, %18, %cst_6 [1] : vector<8x256xf32> to vector<8xf32>
    %20 = vector.shape_cast %19 : vector<8xf32> to vector<8x1xf32>
    %cst_7 = arith.constant 1.000000e+00 : f32
    %21 = vector.broadcast %cst_7 : f32 to vector<8x1xf32>
    %22 = arith.divf %21, %20 : vector<8x1xf32>
    %23 = vector.broadcast %22 : vector<8x1xf32> to vector<8x256xf32>
    %24 = arith.mulf %18, %23 : vector<8x256xf32>
    %25 = math.log %20 : vector<8x1xf32>
    %26 = vector.broadcast %25 : vector<8x1xf32> to vector<8x256xf32>
    %27 = arith.subf %17, %26 : vector<8x256xf32>
    %28 = arith.subf %27, %10 : vector<8x256xf32>
    %29 = arith.mulf %24, %28 : vector<8x256xf32>
    %c0_8 = arith.constant 0 : index
    %c0_9 = arith.constant 0 : index
    %30 = vector.load %arg3[%c0_8, %c0_9] : memref<8x1xf32, #tpu.memory_space<vmem>>, vector<8x1xf32>
    %31 = vector.broadcast %30 : vector<8x1xf32> to vector<8x256xf32>
    %32 = arith.mulf %29, %31 : vector<8x256xf32>
    %33 = vector.shape_cast %32 : vector<8x256xf32> to vector<1x8x256xf32>
    %cst_10 = arith.constant dense<0.000000e+00> : vector<8x256xf32>
    %34 = vector.multi_reduction <add>, %33, %cst_10 [0] : vector<1x8x256xf32> to vector<8x256xf32>
    %c0_11 = arith.constant 0 : index
    %c0_12 = arith.constant 0 : index
    %35 = vector.load %arg4[%c0_11, %c0_12] : memref<8x256xf32, #tpu.memory_space<vmem>>, vector<8x256xf32>
    tpu.vector_store %arg4[%c0_11, %c0_12], %34 {strides = array<i32>} : memref<8x256xf32, #tpu.memory_space<vmem>>, vector<8x256xf32>,
    return
  }
  func.func @transform_0(%arg0: i32) -> (i32, i32) {
    %c0_i32 = arith.constant 0 : i32
    %c0_i32_0 = arith.constant 0 : i32
    return %arg0, %c0_i32 : i32, i32
  }
  func.func @transform_1(%arg0: i32) -> (i32, i32) {
    %c0_i32 = arith.constant 0 : i32
    %c0_i32_0 = arith.constant 0 : i32
    return %arg0, %c0_i32 : i32, i32
  }
  func.func @transform_2(%arg0: i32) -> (i32, i32) {
    %c0_i32 = arith.constant 0 : i32
    %c0_i32_0 = arith.constant 0 : i32
    return %arg0, %c0_i32 : i32, i32
  }
  func.func @transform_3(%arg0: i32) -> (i32, i32) {
    %c0_i32 = arith.constant 0 : i32
    %c0_i32_0 = arith.constant 0 : i32
    return %arg0, %c0_i32 : i32, i32
  }
}

</mosaic_0001>

<llo_original>
// kernel: tpu_custom_call.1
$region0: #{tpu_custom_call.1}
  #allocation0 [shape = 'u32[]', space=smem, size = 0x4, offset = 0x4, fixed_abs, tag = 'smem constant byte address 0x4 - core index']
  #allocation1 [shape = 'u32[144,128]{1,0:T(1,128)}', space=vmem, size = 0x12000, scoped, tag = 'internal scratch']
  %s0 = inlined_call_operand.hbm [shape: f32[8,256], index: 0, kind: input, shape index: {}]
  %s1 = inlined_call_operand.hbm [shape: f32[8,256], index: 1, kind: input, shape index: {}]
  %s2 = inlined_call_operand.vmem [shape: f32[8,1], index: 2, kind: input, shape index: {}]
  %s3 = inlined_call_operand.hbm [shape: f32[8,256], index: 3, kind: output, shape index: {}]
  %s4 = sld [smem:[#allocation0]]
  $region30: #{tpu_custom_call.1} parent=0
    _
  %s6 = ssub.s32 1, %s4
  %s7 = scalar_select 0, %s6, %s4
  $region1: #{tpu_custom_call.1} parent=0
    #allocation2 [shape = 'u8[8192]{0}', space=vmem, size = 0x2000, scoped, tag = 'input window, operand 0, single buffered']
    #allocation3 [shape = 's32[1]{0}', space=sflag, size = 0x4, scoped, tag = 'scoped memory for tpu_custom_call.1']
    #allocation4 [shape = 's32[1]{0}', space=sflag, size = 0x4, scoped, tag = 'scoped memory for tpu_custom_call.1']
    #allocation5 [shape = 'u8[8192]{0}', space=vmem, size = 0x2000, scoped, tag = 'input window, operand 1, single buffered']
    #allocation6 [shape = 's32[1]{0}', space=sflag, size = 0x4, scoped, tag = 'scoped memory for tpu_custom_call.1']
    #allocation7 [shape = 'u8[8192]{0}', space=vmem, size = 0x2000, scoped, tag = 'output window, operand 0, single buffered']
    %8 = vsyncpa [#allocation3], 0
    %9 = vsyncpa [#allocation6], 0
    %10 = vsyncpa [#allocation4], 0
    // Predicated region
    $region2: #{tpu_custom_call.1} parent=1 // pred_check
      _
    $region3: #{tpu_custom_call.1} parent=1 // pred_check_branch
      %12 = sbr.rel (0) target = $region5
    $region4: #{tpu_custom_call.1} parent=1 // pred_region
      %s14 = ssub.s32 256, 256
      %15 = vsyncadd [#allocation3], %s14
      %s17 = sshll.u32 [#allocation2], 4
      %s18 = int_to_ptr.vmem [resolvable:$true] %s17
      %20 = dma.hbm_to_vmem [thread:$0]  %s0, 256, %s18, [#allocation3]
    $region5: #{tpu_custom_call.1} parent=1 // pred_fallthru
      _
    // Predicated region
    $region6: #{tpu_custom_call.1} parent=1 // pred_check
      _
    $region7: #{tpu_custom_call.1} parent=1 // pred_check_branch
      %22 = sbr.rel (0) target = $region9
    $region8: #{tpu_custom_call.1} parent=1 // pred_region
      %s24 = ssub.s32 256, 256
      %25 = vsyncadd [#allocation6], %s24
      %s27 = sshll.u32 [#allocation5], 4
      %s28 = int_to_ptr.vmem [resolvable:$true] %s27
      %30 = dma.hbm_to_vmem [thread:$0]  %s1, 256, %s28, [#allocation6]
    $region9: #{tpu_custom_call.1} parent=1 // pred_fallthru
      _
    // Predicated region
    $region10: #{tpu_custom_call.1} parent=1 // pred_check
      _
    $region11: #{tpu_custom_call.1} parent=1 // pred_check_branch
      %32 = sbr.rel (0) target = $region13
    $region12: #{tpu_custom_call.1} parent=1 // pred_region
      _
    $region13: #{tpu_custom_call.1} parent=1 // pred_fallthru
      _
    // Predicated region
    $region14: #{tpu_custom_call.1} parent=1 // pred_check
      _
    $region15: #{tpu_custom_call.1} parent=1 // pred_check_branch
      %34 = sbr.rel (0) target = $region17
    $region16: #{tpu_custom_call.1} parent=1 // pred_region
      %35 = dma.done [#allocation3], 256
    $region17: #{tpu_custom_call.1} parent=1 // pred_fallthru
      _
    // Predicated region
    $region18: #{tpu_custom_call.1} parent=1 // pred_check
      _
    $region19: #{tpu_custom_call.1} parent=1 // pred_check_branch
      %37 = sbr.rel (0) target = $region21
    $region20: #{tpu_custom_call.1} parent=1 // pred_region
      %38 = dma.done [#allocation6], 256
    $region21: #{tpu_custom_call.1} parent=1 // pred_fallthru
      _
    %v39 = vld [vmem:[#allocation2] sm:$0xff]
    %v40 = vld [vmem:[#allocation2 + $0x8] sm:$0xff]
    %v41 = vmax.f32 %v39, %v40
    %42 = vmax.xlane.f32.xlu0 %v41
    %v43 = vpop.xlane.xlu0 %42
    %v44 = vsub.f32 %v39, %v43
    %v45 = vsub.f32 %v40, %v43
    %v46 = vmul.f32 %v44, 1.442695
    %v47 = vpow.pop %v46
    %v48 = vmul.f32 %v45, 1.442695
    %v49 = vpow.pop %v48
    %v50 = vadd.f32 %v47, %v49
    %51 = vadd.xlane.f32.xlu0 %v50
    %v52 = vpop.xlane.xlu0 %51
    %v53 = vlog2.pop %v52
    %v54 = vmul.f32 %v53, 0.6931472
    %v55 = vsub.f32 %v44, %v54
    %v56 = vsub.f32 %v45, %v54
    %v57 = vld [vmem:[#allocation5] sm:$0xff]
    %v58 = vld [vmem:[#allocation5 + $0x8] sm:$0xff]
    %v59 = vmul.f32 %v57, 10.0
    %v60 = vmul.f32 %v58, 10.0
    %v61 = vmax.f32 %v59, %v60
    %62 = vmax.xlane.f32.xlu0 %v61
    %v63 = vpop.xlane.xlu0 %62
    %v64 = vsub.f32 %v59, %v63
    %v65 = vsub.f32 %v60, %v63
    %v66 = vmul.f32 %v64, 1.442695
    %v67 = vpow.pop %v66
    %v68 = vmul.f32 %v65, 1.442695
    %v69 = vpow.pop %v68
    %v70 = vadd.f32 %v67, %v69
    %71 = vadd.xlane.f32.xlu0 %v70
    %v72 = vpop.xlane.xlu0 %71
    %v73 = vrcp.pop %v72
    %v74 = vmul.f32 1.0, %v73
    %v75 = vmul.f32 %v67, %v74
    %v76 = vmul.f32 %v69, %v74
    %v77 = vlog2.pop %v72
    %v78 = vmul.f32 %v77, 0.6931472
    %v79 = vsub.f32 %v64, %v78
    %v80 = vsub.f32 %v65, %v78
    %v81 = vsub.f32 %v79, %v55
    %v82 = vsub.f32 %v80, %v56
    %v83 = vmul.f32 %v75, %v81
    %v84 = vmul.f32 %v76, %v82
    %v85 = vld [vmem:[%s2] sm:$0xff]
    %87 = vset.pattern.permute.xlu0 0
    %88 = vperm.xlu0 %87, %v85
    %v89 = vpop.permute.xlu0 %88
    %v91 = vmul.f32 %v83, %v89
    %v92 = vmul.f32 %v84, %v89
    %v93 = vadd.f32 %v91, 0.0
    %v94 = vadd.f32 %v92, 0.0
    %95 = vst [vmem:[#allocation7] sm:$0xff] %v93
    %96 = vst [vmem:[#allocation7 + $0x8] sm:$0xff] %v94
    // Predicated region
    $region22: #{tpu_custom_call.1} parent=1 // pred_check
      _
    $region23: #{tpu_custom_call.1} parent=1 // pred_check_branch
      %98 = sbr.rel (0) target = $region25
    $region24: #{tpu_custom_call.1} parent=1 // pred_region
      %s100 = ssub.s32 256, 256
      %101 = vsyncadd [#allocation4], %s100
      %s103 = sshll.u32 [#allocation7], 4
      %s104 = int_to_ptr.vmem [resolvable:$true] %s103
      %106 = dma.vmem_to_hbm [thread:$0]  %s104, 256, %s3, [#allocation4]
    $region25: #{tpu_custom_call.1} parent=1 // pred_fallthru
      _
    // Predicated region
    $region26: #{tpu_custom_call.1} parent=1 // pred_check
      _
    $region27: #{tpu_custom_call.1} parent=1 // pred_check_branch
      %108 = sbr.rel (0) target = $region29
    $region28: #{tpu_custom_call.1} parent=1 // pred_region
      %109 = dma.done [#allocation4], 256
    $region29: #{tpu_custom_call.1} parent=1 // pred_fallthru
      _
    %110 = vsyncpa [#allocation3], 1
    %111 = vsyncpa [#allocation6], 1
    %112 = vsyncpa [#allocation4], 1

</llo_original>
